<compile_context>
chip_gen: v6e
topology: v6e:2x2x1
jax: 0.10.0
libtpu: 0.0.40
codegen_flags: <defaults>
</compile_context>

<pallas_src>
import functools

import jax
import jax.numpy as jnp
from jax.experimental import pallas as pl
from jax.experimental.pallas import tpu as pltpu


def _knw_cell_kernel(ctrl1, n_priors, *refs):
    x_ref, h_ref, w_ref, b_ref = refs[:4]
    prior_refs = refs[4:4 + n_priors]
    out_ref, hnew_ref = refs[4 + n_priors], refs[5 + n_priors]

    x = x_ref[...].astype(jnp.float32)        # (TB, L)
    w = w_ref[...]                            # (4, L): [ws_w, wr_w, c0*h2o_w, c0*h2o_b]

    # Set gate: VPU multiply + XLU lane reduce (MXU with N=1 is wasteful).
    gs = jnp.sum(x * w[0:1, :], axis=-1, keepdims=True) + b_ref[0]
    ht = jax.nn.sigmoid(gs) + h_ref[...].astype(jnp.float32)      # (TB, 1)

    # out = ctrl0 * h2o(ht) [+ priors]; ctrl0 is pre-folded into w rows 2-3.
    output = ht * w[2:3, :] + w[3:4, :]                           # (TB, L)
    for p_ref in prior_refs:
        # row priors are (TB, L); resident priors are (1, L) -> VPU broadcast
        output = output + p_ref[...].astype(jnp.float32)

    # LogSoftmax over the lane dimension.
    m = jnp.max(output, axis=-1, keepdims=True)
    shifted = output - m
    lse = jnp.log(jnp.sum(jnp.exp(shifted), axis=-1, keepdims=True))
    out_ref[...] = (shifted - lse).astype(out_ref.dtype)

    # hidden' = (1 - sigmoid(Wr(x))) * ht * ctrl1
    if ctrl1 == 0.0:
        # trace-time dead-branch elimination (IITNN / IITNI)
        hnew_ref[...] = jnp.zeros_like(hnew_ref)
    else:
        gr = jnp.sum(x * w[1:2, :], axis=-1, keepdims=True) + b_ref[1]
        hnew = (1.0 - jax.nn.sigmoid(gr)) * ht * ctrl1
        hnew_ref[...] = hnew.astype(hnew_ref.dtype)


def _round_up(v, m):
    return ((v + m - 1) // m) * m


def _choose_tb(B, L, n_row_streams, elt_bytes):
    """Batch tile size from a double-buffered VMEM working-set budget."""
    budget = 24 << 20                              # leaves headroom on v7x (64 MiB)
    per_batch_row = 2 * max(1, n_row_streams) * L * elt_bytes   # double-buffered
    tb_cap = max(8, min(4096, (budget // per_batch_row) // 8 * 8))
    if B < 16:
        return B                                   # one full (tiny) block
    # Keep >= 2 grid steps when the batch allows so the "parallel" axis can
    # shard across both TensorCores on dual-TC chips (v7x).
    tb = min(tb_cap, _round_up(pl.cdiv(B, 2), 8))
    return min(tb, B)


def _prep_prior(a, B, L, io_dtype):
    """Classify a prior: 'row' (streamed (B, L)) vs 'res' (resident (1, L))."""
    a = jnp.asarray(a)
    if a.ndim == 3 and a.shape[0] == 1:
        a = a[0]
    if a.ndim == 2 and a.shape[0] == B and B > 1:
        return jnp.broadcast_to(a, (B, L)).astype(io_dtype), 'row'
    # batch-independent (scalar, (L,), (1, L), (1, 1)): keep tiny & resident,
    # broadcast inside the kernel instead of materializing (B, L) in HBM.
    return jnp.broadcast_to(jnp.atleast_2d(a), (1, L)).astype(jnp.float32), 'res'


def knw_cell_forward(params, x, hidden, mode, plogits=None, add_prior=None,
                     io_dtype=None):
    """x: (1, B, L); hidden: (1, B, 1). Returns (log_probs, new_hidden)."""
    ctrl = {'IITNN': (-1.0, 0.0), 'IITNI': (1.0, 0.0),
            'SETRESET': (1.0, 1.0), 'SETRESETN': (-1.0, 1.0)}[mode]

    x2 = jnp.asarray(x)
    if x2.ndim == 3:
        x2 = x2[0]                                 # (B, L)
    h2 = jnp.asarray(hidden, jnp.float32)
    if h2.ndim == 3:
        h2 = h2[0]                                 # (B, 1)
    B, L = x2.shape

    if io_dtype is None:
        io_dtype = jnp.bfloat16 if x2.dtype == jnp.bfloat16 else jnp.float32
    elt_bytes = 2 if io_dtype == jnp.bfloat16 else 4
    x2 = x2.astype(io_dtype)

    # Optional priors: streamed (B, L) rows or resident (1, L) rows.
    priors = []
    for p in (plogits, add_prior):
        if p is not None:
            priors.append(_prep_prior(p, B, L, io_dtype))

    # Consolidated parameters: (4, L) VMEM block (ctrl0 folded in) + (2,) SMEM.
    c0 = ctrl[0]
    wmat = jnp.concatenate([
        jnp.reshape(params['ws_w'], (1, L)),
        jnp.reshape(params['wr_w'], (1, L)),
        c0 * jnp.reshape(params['h2o_w'], (1, L)),
        c0 * jnp.reshape(params['h2o_b'], (1, L)),
    ], axis=0).astype(jnp.float32)                                  # (4, L)
    biases = jnp.stack([jnp.reshape(params['ws_b'], ()),
                        jnp.reshape(params['wr_b'], ())]).astype(jnp.float32)

    n_row_streams = 2 + sum(1 for _, kind in priors if kind == 'row')  # x, out, priors
    TB = _choose_tb(B, L, n_row_streams, elt_bytes)
    grid = (pl.cdiv(B, TB),)

    row_spec = pl.BlockSpec((TB, L), lambda i: (i, 0))
    col_spec = pl.BlockSpec((TB, 1), lambda i: (i, 0))
    res_spec = pl.BlockSpec((1, L), lambda i: (0, 0))

    in_specs = [
        row_spec,                                            # x
        col_spec,                                            # hidden
        pl.BlockSpec((4, L), lambda i: (0, 0)),              # params (resident)
        pl.BlockSpec(memory_space=pltpu.MemorySpace.SMEM),   # scalar biases
    ]
    operands = [x2, h2, wmat, biases]
    for arr, kind in priors:
        in_specs.append(row_spec if kind == 'row' else res_spec)
        operands.append(arr)

    out, hnew = pl.pallas_call(
        functools.partial(_knw_cell_kernel, ctrl[1], len(priors)),
        grid=grid,
        out_shape=(jax.ShapeDtypeStruct((B, L), io_dtype),
                   jax.ShapeDtypeStruct((B, 1), jnp.float32)),
        in_specs=in_specs,
        out_specs=(row_spec, col_spec),
        compiler_params=pltpu.CompilerParams(
            dimension_semantics=("parallel",),
            vmem_limit_bytes=48 * 1024 * 1024),
    )(*operands)

    return out[None, ...], hnew[None, ...]


def init_params(key, lsize):
    """Deterministic parameter init matching the PyTorch layer shapes."""
    ks = jax.random.split(key, 6)
    bound_s = 1.0 / jnp.sqrt(lsize)
    bound_o = 1.0
    return {
        'ws_w': jax.random.uniform(ks[0], (1, lsize), jnp.float32, -bound_s, bound_s),
        'ws_b': jax.random.uniform(ks[1], (1,), jnp.float32, -bound_s, bound_s),
        'wr_w': jax.random.uniform(ks[2], (1, lsize), jnp.float32, -bound_s, bound_s),
        'wr_b': jax.random.uniform(ks[3], (1,), jnp.float32, -bound_s, bound_s),
        'h2o_w': jax.random.uniform(ks[4], (lsize, 1), jnp.float32, -bound_o, bound_o),
        'h2o_b': jax.random.uniform(ks[5], (lsize,), jnp.float32, -bound_o, bound_o),
    }


def _reference_forward(params, x, hidden, mode, plogits=None, add_prior=None):
    """Pure-JAX reference mirroring the PyTorch forward."""
    ctrl = {'IITNN': (-1.0, 0.0), 'IITNI': (1.0, 0.0),
            'SETRESET': (1.0, 1.0), 'SETRESETN': (-1.0, 1.0)}[mode]
    L = params['ws_w'].shape[-1]
    ws = lambda a: jnp.sum(a * params['ws_w'], -1, keepdims=True) + params['ws_b']
    wr = lambda a: jnp.sum(a * params['wr_w'], -1, keepdims=True) + params['wr_b']
    h2o = lambda a: a * params['h2o_w'].reshape(1, L) + params['h2o_b']
    ht = jax.nn.sigmoid(ws(x)) + hidden
    out = ctrl[0] * h2o(ht)
    if plogits is not None:
        out = out + plogits
    if add_prior is not None:
        out = out + add_prior
    out = jax.nn.log_softmax(out, axis=-1)
    resetter = 1.0 - jax.nn.sigmoid(wr(x))
    return out, resetter * ht * ctrl[1]


if __name__ == "__main__":
    B, L = 8, 16
    key = jax.random.PRNGKey(0)
    kp, kx, kh, kpl, kap, kx2 = jax.random.split(key, 6)
    params = init_params(kp, L)

    x = jax.random.normal(kx, (1, B, L), jnp.float32)
    hidden = jnp.zeros((1, B, 1), jnp.float32)              # initHidden(batch=B)
    plogits = jax.random.normal(kpl, (1, B, L), jnp.float32)         # streamed prior
    add_prior = jax.random.normal(kap, (1, L), jnp.float32)          # resident prior

    # Mode with resetter (ctrl1=1), one streamed + one resident prior.
    out, hnew = knw_cell_forward(params, x, hidden, "SETRESET",
                                 plogits=plogits, add_prior=add_prior)
    jax.block_until_ready((out, hnew))
    ref_out, ref_h = _reference_forward(params, x, hidden, "SETRESET",
                                        plogits=plogits, add_prior=add_prior)
    assert out.shape == (1, B, L) and hnew.shape == (1, B, 1)
    assert jnp.allclose(out, ref_out, atol=1e-5, rtol=1e-5)
    assert jnp.allclose(hnew, ref_h, atol=1e-5, rtol=1e-5)

    # ctrl1 == 0 mode, no priors (exercises the trace-time elided paths).
    out2, hnew2 = knw_cell_forward(params, x, hidden, "IITNN")
    jax.block_until_ready((out2, hnew2))
    ref_out2, ref_h2 = _reference_forward(params, x, hidden, "IITNN")
    assert jnp.allclose(out2, ref_out2, atol=1e-5, rtol=1e-5)
    assert jnp.allclose(hnew2, ref_h2, atol=1e-5, rtol=1e-5)

    # Larger batch -> >= 2 grid steps (tests tiling + partial last block),
    # both priors streamed as (B, L) rows.
    B3 = 40
    x3 = jax.random.normal(kx2, (1, B3, L), jnp.float32)
    h3 = 0.1 * jnp.ones((1, B3, 1), jnp.float32)
    pl3 = jax.random.normal(kh, (1, B3, L), jnp.float32)
    out3, hnew3 = knw_cell_forward(params, x3, h3, "SETRESETN",
                                   plogits=pl3, add_prior=pl3)
    jax.block_until_ready((out3, hnew3))
    ref_out3, ref_h3 = _reference_forward(params, x3, h3, "SETRESETN",
                                          plogits=pl3, add_prior=pl3)
    assert jnp.allclose(out3, ref_out3, atol=1e-5, rtol=1e-5)
    assert jnp.allclose(hnew3, ref_h3, atol=1e-5, rtol=1e-5)

    print("KERNEL_OK")
</pallas_src>

<mosaic_0001>
module attributes {stable_mosaic.version = 11 : i64} {
  func.func @_knw_cell_kernel(%arg0: i32, %arg1: memref<8x16xf32, #tpu.memory_space<vmem>>, %arg2: memref<8x1xf32, #tpu.memory_space<vmem>>, %arg3: memref<4x16xf32, #tpu.memory_space<vmem>>, %arg4: memref<2xf32, #tpu.memory_space<smem>>, %arg5: memref<8x16xf32, #tpu.memory_space<vmem>>, %arg6: memref<1x16xf32, #tpu.memory_space<vmem>>, %arg7: memref<8x16xf32, #tpu.memory_space<vmem>>, %arg8: memref<8x1xf32, #tpu.memory_space<vmem>>) attributes {dimension_semantics = [#tpu.dimension_semantics<parallel>], iteration_bounds = array<i64: 1>, scalar_prefetch = 0 : i64, scratch_operands = 0 : i64, tpu.core_type = #tpu.core_type<tc>, window_params = [{transform_indices = @transform_0, window_bounds = array<i64: 8, 16>}, {transform_indices = @transform_1, window_bounds = array<i64: 8, 1>}, {pipeline_mode = #tpu.pipeline_mode<synchronous>, transform_indices = @transform_2, window_bounds = array<i64: 4, 16>}, {transform_indices = @transform_3, window_bounds = array<i64: 2>}, {transform_indices = @transform_4, window_bounds = array<i64: 8, 16>}, {pipeline_mode = #tpu.pipeline_mode<synchronous>, transform_indices = @transform_5, window_bounds = array<i64: 1, 16>}, {transform_indices = @transform_6, window_bounds = array<i64: 8, 16>}, {transform_indices = @transform_7, window_bounds = array<i64: 8, 1>}]} {
    %c0 = arith.constant 0 : index
    %c0_0 = arith.constant 0 : index
    %0 = vector.load %arg1[%c0, %c0_0] : memref<8x16xf32, #tpu.memory_space<vmem>>, vector<8x16xf32>
    %c0_1 = arith.constant 0 : index
    %c0_2 = arith.constant 0 : index
    %1 = vector.load %arg3[%c0_1, %c0_2] : memref<4x16xf32, #tpu.memory_space<vmem>>, vector<4x16xf32>
    %2 = vector.extract_strided_slice %1 {offsets = [0, 0], sizes = [1, 16], strides = [1, 1]} : vector<4x16xf32> to vector<1x16xf32>
    %3 = vector.broadcast %2 : vector<1x16xf32> to vector<8x16xf32>
    %4 = arith.mulf %0, %3 : vector<8x16xf32>
    %cst = arith.constant dense<0.000000e+00> : vector<8xf32>
    %5 = vector.multi_reduction <add>, %4, %cst [1] : vector<8x16xf32> to vector<8xf32>
    %6 = vector.shape_cast %5 : vector<8xf32> to vector<8x1xf32>
    %c0_3 = arith.constant 0 : index
    %7 = memref.load %arg4[%c0_3] : memref<2xf32, #tpu.memory_space<smem>>
    %8 = vector.broadcast %7 : f32 to vector<8x1xf32>
    %9 = arith.addf %6, %8 : vector<8x1xf32>
    %10 = arith.negf %9 : vector<8x1xf32>
    %11 = math.exp %10 : vector<8x1xf32>
    %cst_4 = arith.constant 1.000000e+00 : f32
    %12 = vector.broadcast %cst_4 : f32 to vector<8x1xf32>
    %13 = arith.addf %12, %11 : vector<8x1xf32>
    %14 = arith.divf %12, %13 : vector<8x1xf32>
    %c0_5 = arith.constant 0 : index
    %c0_6 = arith.constant 0 : index
    %15 = vector.load %arg2[%c0_5, %c0_6] : memref<8x1xf32, #tpu.memory_space<vmem>>, vector<8x1xf32>
    %16 = arith.addf %14, %15 : vector<8x1xf32>
    %17 = vector.extract_strided_slice %1 {offsets = [2, 0], sizes = [1, 16], strides = [1, 1]} : vector<4x16xf32> to vector<1x16xf32>
    %18 = vector.broadcast %16 : vector<8x1xf32> to vector<8x16xf32>
    %19 = vector.broadcast %17 : vector<1x16xf32> to vector<8x16xf32>
    %20 = arith.mulf %18, %19 : vector<8x16xf32>
    %21 = vector.extract_strided_slice %1 {offsets = [3, 0], sizes = [1, 16], strides = [1, 1]} : vector<4x16xf32> to vector<1x16xf32>
    %22 = vector.broadcast %21 : vector<1x16xf32> to vector<8x16xf32>
    %23 = arith.addf %20, %22 : vector<8x16xf32>
    %c0_7 = arith.constant 0 : index
    %c0_8 = arith.constant 0 : index
    %24 = vector.load %arg5[%c0_7, %c0_8] : memref<8x16xf32, #tpu.memory_space<vmem>>, vector<8x16xf32>
    %25 = arith.addf %23, %24 : vector<8x16xf32>
    %c0_9 = arith.constant 0 : index
    %c0_10 = arith.constant 0 : index
    %26 = vector.load %arg6[%c0_9, %c0_10] : memref<1x16xf32, #tpu.memory_space<vmem>>, vector<1x16xf32>
    %27 = vector.broadcast %26 : vector<1x16xf32> to vector<8x16xf32>
    %28 = arith.addf %25, %27 : vector<8x16xf32>
    %cst_11 = arith.constant dense<0xFF800000> : vector<8xf32>
    %29 = vector.multi_reduction <maximumf>, %28, %cst_11 [1] : vector<8x16xf32> to vector<8xf32>
    %30 = vector.shape_cast %29 : vector<8xf32> to vector<8x1xf32>
    %31 = vector.broadcast %30 : vector<8x1xf32> to vector<8x16xf32>
    %32 = arith.subf %28, %31 : vector<8x16xf32>
    %33 = math.exp %32 : vector<8x16xf32>
    %cst_12 = arith.constant dense<0.000000e+00> : vector<8xf32>
    %34 = vector.multi_reduction <add>, %33, %cst_12 [1] : vector<8x16xf32> to vector<8xf32>
    %35 = vector.shape_cast %34 : vector<8xf32> to vector<8x1xf32>
    %36 = math.log %35 : vector<8x1xf32>
    %37 = vector.broadcast %36 : vector<8x1xf32> to vector<8x16xf32>
    %38 = arith.subf %32, %37 : vector<8x16xf32>
    %c0_13 = arith.constant 0 : index
    %c0_14 = arith.constant 0 : index
    %39 = vector.load %arg7[%c0_13, %c0_14] : memref<8x16xf32, #tpu.memory_space<vmem>>, vector<8x16xf32>
    tpu.vector_store %arg7[%c0_13, %c0_14], %38 {strides = array<i32>} : memref<8x16xf32, #tpu.memory_space<vmem>>, vector<8x16xf32>,
    %40 = vector.extract_strided_slice %1 {offsets = [1, 0], sizes = [1, 16], strides = [1, 1]} : vector<4x16xf32> to vector<1x16xf32>
    %41 = vector.broadcast %40 : vector<1x16xf32> to vector<8x16xf32>
    %42 = arith.mulf %0, %41 : vector<8x16xf32>
    %cst_15 = arith.constant dense<0.000000e+00> : vector<8xf32>
    %43 = vector.multi_reduction <add>, %42, %cst_15 [1] : vector<8x16xf32> to vector<8xf32>
    %44 = vector.shape_cast %43 : vector<8xf32> to vector<8x1xf32>
    %c1 = arith.constant 1 : index
    %45 = memref.load %arg4[%c1] : memref<2xf32, #tpu.memory_space<smem>>
    %46 = vector.broadcast %45 : f32 to vector<8x1xf32>
    %47 = arith.addf %44, %46 : vector<8x1xf32>
    %48 = arith.negf %47 : vector<8x1xf32>
    %49 = math.exp %48 : vector<8x1xf32>
    %cst_16 = arith.constant 1.000000e+00 : f32
    %50 = vector.broadcast %cst_16 : f32 to vector<8x1xf32>
    %51 = arith.addf %50, %49 : vector<8x1xf32>
    %52 = arith.divf %50, %51 : vector<8x1xf32>
    %cst_17 = arith.constant 1.000000e+00 : f32
    %53 = vector.broadcast %cst_17 : f32 to vector<8x1xf32>
    %54 = arith.subf %53, %52 : vector<8x1xf32>
    %55 = arith.mulf %54, %16 : vector<8x1xf32>
    %cst_18 = arith.constant 1.000000e+00 : f32
    %56 = vector.broadcast %cst_18 : f32 to vector<8x1xf32>
    %57 = arith.mulf %55, %56 : vector<8x1xf32>
    %c0_19 = arith.constant 0 : index
    %c0_20 = arith.constant 0 : index
    %58 = vector.load %arg8[%c0_19, %c0_20] : memref<8x1xf32, #tpu.memory_space<vmem>>, vector<8x1xf32>
    tpu.vector_store %arg8[%c0_19, %c0_20], %57 {strides = array<i32>} : memref<8x1xf32, #tpu.memory_space<vmem>>, vector<8x1xf32>,
    return
  }
  func.func @transform_0(%arg0: i32) -> (i32, i32) {
    %c0_i32 = arith.constant 0 : i32
    %c0_i32_0 = arith.constant 0 : i32
    return %arg0, %c0_i32 : i32, i32
  }
  func.func @transform_1(%arg0: i32) -> (i32, i32) {
    %c0_i32 = arith.constant 0 : i32
    %c0_i32_0 = arith.constant 0 : i32
    return %arg0, %c0_i32 : i32, i32
  }
  func.func @transform_2(%arg0: i32) -> (i32, i32) {
    %c0_i32 = arith.constant 0 : i32
    %c0_i32_0 = arith.constant 0 : i32
    %c0_i32_1 = arith.constant 0 : i32
    return %c0_i32, %c0_i32_0 : i32, i32
  }
  func.func @transform_3(%arg0: i32) -> i32 {
    %c0_i32 = arith.constant 0 : i32
    %c0_i32_0 = arith.constant 0 : i32
    return %c0_i32 : i32
  }
  func.func @transform_4(%arg0: i32) -> (i32, i32) {
    %c0_i32 = arith.constant 0 : i32
    %c0_i32_0 = arith.constant 0 : i32
    return %arg0, %c0_i32 : i32, i32
  }
  func.func @transform_5(%arg0: i32) -> (i32, i32) {
    %c0_i32 = arith.constant 0 : i32
    %c0_i32_0 = arith.constant 0 : i32
    %c0_i32_1 = arith.constant 0 : i32
    return %c0_i32, %c0_i32_0 : i32, i32
  }
  func.func @transform_6(%arg0: i32) -> (i32, i32) {
    %c0_i32 = arith.constant 0 : i32
    %c0_i32_0 = arith.constant 0 : i32
    return %arg0, %c0_i32 : i32, i32
  }
  func.func @transform_7(%arg0: i32) -> (i32, i32) {
    %c0_i32 = arith.constant 0 : i32
    %c0_i32_0 = arith.constant 0 : i32
    return %arg0, %c0_i32 : i32, i32
  }
}

</mosaic_0001>

<llo_original>
// kernel: tpu_custom_call.1
$region0: #{tpu_custom_call.1}
  #allocation0 [shape = 'u32[]', space=smem, size = 0x4, offset = 0x4, fixed_abs, tag = 'smem constant byte address 0x4 - core index']
  #allocation1 [shape = 'u32[144,128]{1,0:T(1,128)}', space=vmem, size = 0x12000, scoped, tag = 'internal scratch']
  %s0 = inlined_call_operand.vmem [shape: f32[8,16], index: 0, kind: input, shape index: {}]
  %s1 = inlined_call_operand.vmem [shape: f32[8,1], index: 1, kind: input, shape index: {}]
  %s2 = inlined_call_operand.hbm [shape: f32[4,16], index: 2, kind: input, shape index: {}]
  %s3 = inlined_call_operand.hbm [shape: f32[2], index: 3, kind: input, shape index: {}]
  %s4 = inlined_call_operand.vmem [shape: f32[8,16], index: 4, kind: input, shape index: {}]
  %s5 = inlined_call_operand.vmem [shape: f32[1,16], index: 5, kind: input, shape index: {}]
  %s6 = inlined_call_operand.hbm [shape: f32[8,16], index: 6, kind: output, shape index: {0}]
  %s7 = inlined_call_operand.vmem [shape: f32[8,1], index: 7, kind: output, shape index: {1}]
  %8 = xla_tuple %s6, %s7
  %s9 = sld [smem:[#allocation0]]
  $region50: #{tpu_custom_call.1} parent=0
    _
  %s11 = ssub.s32 1, %s9
  %s12 = scalar_select 0, %s11, %s9
  $region1: #{tpu_custom_call.1} parent=0
    #allocation2 [shape = 'u8[2048]{0}', space=vmem, size = 0x800, scoped, tag = 'input window, operand 2, single buffered']
    #allocation3 [shape = 's32[1]{0}', space=sflag, size = 0x4, scoped, tag = 'scoped memory for tpu_custom_call.1']
    #allocation4 [shape = 's32[1]{0}', space=sflag, size = 0x4, scoped, tag = 'scoped memory for tpu_custom_call.1']
    #allocation5 [shape = 's32[1]{0}', space=sflag, size = 0x4, scoped, tag = 'scoped memory for tpu_custom_call.1']
    #allocation6 [shape = 'u8[512]{0}', space=smem, size = 0x200, scoped, tag = 'input window, operand 3, single buffered']
    #allocation7 [shape = 'u8[4096]{0}', space=vmem, size = 0x1000, scoped, tag = 'output window, operand 0, single buffered']
    %13 = vsyncpa [#allocation3], 0
    %14 = vsyncpa [#allocation5], 0
    %15 = vsyncpa [#allocation4], 0
    // Predicated region
    $region2: #{tpu_custom_call.1} parent=1 // pred_check
      _
    $region3: #{tpu_custom_call.1} parent=1 // pred_check_branch
      %17 = sbr.rel (0) target = $region5
    $region4: #{tpu_custom_call.1} parent=1 // pred_region
      _
    $region5: #{tpu_custom_call.1} parent=1 // pred_fallthru
      _
    // Predicated region
    $region6: #{tpu_custom_call.1} parent=1 // pred_check
      _
    $region7: #{tpu_custom_call.1} parent=1 // pred_check_branch
      %19 = sbr.rel (0) target = $region9
    $region8: #{tpu_custom_call.1} parent=1 // pred_region
      _
    $region9: #{tpu_custom_call.1} parent=1 // pred_fallthru
      _
    // Predicated region
    $region10: #{tpu_custom_call.1} parent=1 // pred_check
      _
    $region11: #{tpu_custom_call.1} parent=1 // pred_check_branch
      %21 = sbr.rel (0) target = $region13
    $region12: #{tpu_custom_call.1} parent=1 // pred_region
      %s23 = ssub.s32 64, 64
      %24 = vsyncadd [#allocation3], %s23
      %s26 = sshll.u32 [#allocation2], 4
      %s27 = int_to_ptr.vmem [resolvable:$true] %s26
      %29 = dma.hbm_to_vmem [thread:$0]  %s2, 64, %s27, [#allocation3]
    $region13: #{tpu_custom_call.1} parent=1 // pred_fallthru
      _
    // Predicated region
    $region14: #{tpu_custom_call.1} parent=1 // pred_check
      _
    $region15: #{tpu_custom_call.1} parent=1 // pred_check_branch
      %31 = sbr.rel (0) target = $region17
    $region16: #{tpu_custom_call.1} parent=1 // pred_region
      %s33 = ssub.s32 16, 16
      %34 = vsyncadd [#allocation5], %s33
      %37 = dma.hbm_to_smem %s3, 16, [#allocation6], [#allocation5]
    $region17: #{tpu_custom_call.1} parent=1 // pred_fallthru
      _
    // Predicated region
    $region18: #{tpu_custom_call.1} parent=1 // pred_check
      _
    $region19: #{tpu_custom_call.1} parent=1 // pred_check_branch
      %39 = sbr.rel (0) target = $region21
    $region20: #{tpu_custom_call.1} parent=1 // pred_region
      _
    $region21: #{tpu_custom_call.1} parent=1 // pred_fallthru
      _
    // Predicated region
    $region22: #{tpu_custom_call.1} parent=1 // pred_check
      _
    $region23: #{tpu_custom_call.1} parent=1 // pred_check_branch
      %41 = sbr.rel (0) target = $region25
    $region24: #{tpu_custom_call.1} parent=1 // pred_region
      _
    $region25: #{tpu_custom_call.1} parent=1 // pred_fallthru
      _
    // Predicated region
    $region26: #{tpu_custom_call.1} parent=1 // pred_check
      _
    $region27: #{tpu_custom_call.1} parent=1 // pred_check_branch
      %43 = sbr.rel (0) target = $region29
    $region28: #{tpu_custom_call.1} parent=1 // pred_region
      %44 = dma.done [#allocation3], 64
    $region29: #{tpu_custom_call.1} parent=1 // pred_fallthru
      _
    // Predicated region
    $region30: #{tpu_custom_call.1} parent=1 // pred_check
      _
    $region31: #{tpu_custom_call.1} parent=1 // pred_check_branch
      %46 = sbr.rel (0) target = $region33
    $region32: #{tpu_custom_call.1} parent=1 // pred_region
      %47 = dma.done [#allocation5], 16
    $region33: #{tpu_custom_call.1} parent=1 // pred_fallthru
      _
    %48 = sfence
    %v49 = vld [vmem:[%s0] sm:$0xff]
    %v50 = vld [vmem:[#allocation2] sm:$0xf]
    %v51 = vlaneseq
    %v52 = vshrl.u32 %v51, 7
    %v53 = vsub.s32 0, %v52
    %v54 = vrot.slane %v50, %v53
    %v55 = vmul.f32 %v49, %v54
    %vm56 = vcmask 130048
    %v57 = vsel %vm56, %v55, 0.0
    %58 = vadd.xlane.f32.xlu0 %v57
    %v59 = vpop.xlane.xlu0 %58
    %s60 = sld [smem:[#allocation6]]
    %v61 = vstv %s60
    %v62 = vadd.f32 %v59, %v61
    %v63 = vxor.u32 %v62, 2147483648
    %v64 = vmul.f32 %v63, 1.442695
    %v65 = vpow.pop %v64
    %v66 = vadd.f32 %v65, 1.0
    %v67 = vrcp.pop %v66
    %v68 = vmul.f32 1.0, %v67
    %v69 = vld [vmem:[%s1] sm:$0xff]
    %v70 = vadd.f32 %v68, %v69
    %72 = vset.pattern.permute.xlu0 0
    %73 = vperm.xlu0 %72, %v70
    %v74 = vpop.permute.xlu0 %73
    %v76 = vlaneseq
    %v77 = vshrl.u32 %v76, 7
    %v78 = vsub.s32 2, %v77
    %v79 = vrot.slane %v50, %v78
    %v80 = vmul.f32 %v74, %v79
    %v81 = vlaneseq
    %v82 = vshrl.u32 %v81, 7
    %v83 = vsub.s32 3, %v82
    %v84 = vrot.slane %v50, %v83
    %v85 = vadd.f32 %v80, %v84
    %v86 = vld [vmem:[%s4] sm:$0xff]
    %v87 = vadd.f32 %v85, %v86
    %v88 = vld [vmem:[%s5] sm:$0x1]
    %v90 = vlaneseq
    %v91 = vshrl.u32 %v90, 7
    %v92 = vsub.s32 0, %v91
    %v93 = vrot.slane %v88, %v92
    %v95 = vadd.f32 %v87, %v93
    %v96 = vsel %vm56, %v95, -inf
    %97 = vmax.xlane.f32.xlu0 %v96
    %v98 = vpop.xlane.xlu0 %97
    %v99 = vsub.f32 %v95, %v98
    %v100 = vmul.f32 %v99, 1.442695
    %v101 = vpow.pop %v100
    %v102 = vsel %vm56, %v101, 0.0
    %103 = vadd.xlane.f32.xlu0 %v102
    %v104 = vpop.xlane.xlu0 %103
    %v105 = vlog2.pop %v104
    %v106 = vmul.f32 %v105, 0.6931472
    %v107 = vsub.f32 %v99, %v106
    %108 = vst.msk [vmem:[#allocation7] sm:$0xff] %vm56, %v107
    %v109 = vlaneseq
    %v110 = vshrl.u32 %v109, 7
    %v111 = vsub.s32 1, %v110
    %v112 = vrot.slane %v50, %v111
    %v113 = vmul.f32 %v49, %v112
    %v114 = vsel %vm56, %v113, 0.0
    %115 = vadd.xlane.f32.xlu0 %v114
    %v116 = vpop.xlane.xlu0 %115
    %s117 = sld [smem:[#allocation6 + $0x1]]
    %v118 = vstv %s117
    %v119 = vadd.f32 %v116, %v118
    %v120 = vxor.u32 %v119, 2147483648
    %v121 = vmul.f32 %v120, 1.442695
    %v122 = vpow.pop %v121
    %v123 = vadd.f32 %v122, 1.0
    %v124 = vrcp.pop %v123
    %v125 = vmul.f32 1.0, %v124
    %v126 = vsub.f32 1.0, %v125
    %v127 = vmul.f32 %v126, %v70
    %vm128 = vcmask 7168
    %129 = vst.msk [vmem:[%s7] sm:$0xff] %vm128, %v127
    // Predicated region
    $region34: #{tpu_custom_call.1} parent=1 // pred_check
      _
    $region35: #{tpu_custom_call.1} parent=1 // pred_check_branch
      %131 = sbr.rel (0) target = $region37
    $region36: #{tpu_custom_call.1} parent=1 // pred_region
      %s133 = ssub.s32 128, 128
      %134 = vsyncadd [#allocation4], %s133
      %s136 = sshll.u32 [#allocation7], 4
      %s137 = int_to_ptr.vmem [resolvable:$true] %s136
      %139 = dma.vmem_to_hbm [thread:$0]  %s137, 128, %s6, [#allocation4]
    $region37: #{tpu_custom_call.1} parent=1 // pred_fallthru
      _
    // Predicated region
    $region38: #{tpu_custom_call.1} parent=1 // pred_check
      _
    $region39: #{tpu_custom_call.1} parent=1 // pred_check_branch
      %141 = sbr.rel (0) target = $region41
    $region40: #{tpu_custom_call.1} parent=1 // pred_region
      _
    $region41: #{tpu_custom_call.1} parent=1 // pred_fallthru
      _
    // Predicated region
    $region42: #{tpu_custom_call.1} parent=1 // pred_check
      _
    $region43: #{tpu_custom_call.1} parent=1 // pred_check_branch
      %143 = sbr.rel (0) target = $region45
    $region44: #{tpu_custom_call.1} parent=1 // pred_region
      %144 = dma.done [#allocation4], 128
    $region45: #{tpu_custom_call.1} parent=1 // pred_fallthru
      _
    // Predicated region
    $region46: #{tpu_custom_call.1} parent=1 // pred_check
      _
    $region47: #{tpu_custom_call.1} parent=1 // pred_check_branch
      %146 = sbr.rel (0) target = $region49
    $region48: #{tpu_custom_call.1} parent=1 // pred_region
      _
    $region49: #{tpu_custom_call.1} parent=1 // pred_fallthru
      _
    %147 = vsyncpa [#allocation3], 1
    %148 = vsyncpa [#allocation4], 1
    %149 = vsyncpa [#allocation5], 1

</llo_original>
